<compile_context>
chip_gen: v5e
topology: v5e:2x2
jax: 0.10.0
libtpu: 0.0.40
codegen_flags: <defaults>
</compile_context>

<pallas_src>
import functools

import jax
import jax.numpy as jnp
from jax.experimental import pallas as pl
from jax.experimental.pallas import tpu as pltpu

# torch.nn.RMSNorm(dim) with eps=None uses torch.finfo(float32).eps
RMS_EPS = 1.1920929e-07


def _grn_kernel(x_ref, w_ref, bias_ref, o_ref, *scratch, num_layers):
    # x_ref   : (1, TM, D)  tokens of layer y for this M tile
    # w_ref   : (D, O)      Linear weight (transposed) with RMSNorm gamma folded in
    # bias_ref: (Y, O, D)   per-(layer, output) bias rows (fully resident)
    # o_ref   : (O, TM, D)  output tile (resident across the depth sweep)
    # scratch : optional (O, TM, D) f32 accumulator (only when o_ref is not f32)
    use_scratch = bool(scratch)
    acc_ref = scratch[0] if use_scratch else o_ref

    y = pl.program_id(1)
    O = w_ref.shape[1]

    xy = x_ref[0].astype(jnp.float32)                          # (TM, D)
    # RMSNorm statistics only — gamma is folded into w_ref, xn is never built.
    ms = jnp.mean(xy * xy, axis=-1, keepdims=True)             # (TM, 1)
    inv_rms = jax.lax.rsqrt(ms + RMS_EPS)                      # (TM, 1)

    # Projection of all outputs at once on the (otherwise idle) MXU.
    # relu(z * inv_rms) == relu((x * inv_rms * gamma) @ W) since inv_rms > 0.
    z = jnp.dot(xy, w_ref[...], preferred_element_type=jnp.float32)   # (TM, O)
    g = jnp.maximum(z * inv_rms, 0.0)                                  # (TM, O)

    bias_y = bias_ref[y]                                               # (O, D) f32

    # Per-output update for this layer: x * (gate + bias).  Computed once,
    # consumed by exactly one of the branches below.
    upds = [xy * (g[:, o:o + 1] + bias_y[o][None, :]) for o in range(O)]

    if num_layers == 1:
        for o in range(O):
            o_ref[o] = upds[o].astype(o_ref.dtype)
        return

    is_first = y == 0
    is_last = y == num_layers - 1

    if use_scratch:
        # f32 accumulator separate from the (narrow-dtype) output.
        @pl.when(is_first)
        def _():
            for o in range(O):
                acc_ref[o] = upds[o]

        @pl.when((y > 0) & (y < num_layers - 1))
        def _():
            for o in range(O):
                acc_ref[o] += upds[o]

        @pl.when(is_last)
        def _():
            # Fold the last update directly into the output write: skips the
            # final acc store and the full-tile scratch->output copy.
            for o in range(O):
                o_ref[o] = (acc_ref[o] + upds[o]).astype(o_ref.dtype)
    else:
        # f32 output: accumulate directly in the resident output block
        # (its index_map ignores y) — no scratch, no zero-init, no final copy.
        @pl.when(is_first)
        def _():
            for o in range(O):
                o_ref[o] = upds[o]

        @pl.when(jnp.logical_not(is_first))
        def _():
            for o in range(O):
                o_ref[o] += upds[o]


def _round_up(x, m):
    return ((x + m - 1) // m) * m


def _vmem_params():
    """Generation-aware (vmem_limit_bytes, tile budget) defaults."""
    try:
        cap = int(getattr(pltpu.get_tpu_info(), "vmem_capacity_bytes", 64 << 20))
    except Exception:  # pragma: no cover - conservative fallback
        cap = 64 << 20
    if cap >= (100 << 20):          # v5e / v6e: 128 MiB physical VMEM
        return 96 << 20, 40 << 20
    return 48 << 20, 28 << 20       # v7x (64 MiB physical) / unknown


def _choose_tile_m(M, D, O, in_bytes, out_bytes, use_scratch, budget_bytes):
    # Per-row VMEM footprint of one grid step:
    #   input   : 2 (double-buffer) * D * in_bytes
    #   output  : 2 (double-buffer) * O * D * out_bytes
    #   acc     : O * D * 4 (only when a separate f32 scratch is used)
    #   temps   : ~(4 + O) tile-sized f32 intermediates (xy cast, xy*xy, upd, ...)
    per_row = 2 * D * in_bytes + 2 * O * D * out_bytes
    if use_scratch:
        per_row += O * D * 4
    per_row += (4 + O) * D * 4
    tm = budget_bytes // per_row
    tm = max(8, (tm // 8) * 8)          # sublane multiple
    tm = min(tm, 8192)
    # Megacore (v7x) friendliness: prefer >= 2 M tiles, but never shrink the
    # per-step slab below ~1024 rows (single-TC v5e/v6e gain nothing from it).
    if M >= 2048:
        half = _round_up(-(-M // 2), 8)
        if half >= 1024:
            tm = min(tm, half)
    tm = min(tm, _round_up(M, 8))
    return tm


def grn_forward(tokens, gamma, w, bias, *, out_dtype=None, tile_m=None,
                vmem_limit_bytes=None):
    """tokens: (Y, B, N, D); gamma: (D,); w: (D, O); bias: (O, Y, D)."""
    Y, B, N, D = tokens.shape
    O = w.shape[1]
    M = B * N

    out_dtype = jnp.dtype(tokens.dtype if out_dtype is None else out_dtype)
    # f32 outputs accumulate directly in the output block; anything narrower
    # keeps an f32 VMEM scratch so accumulation stays exact.
    use_scratch = out_dtype != jnp.dtype(jnp.float32)

    default_limit, budget = _vmem_params()
    if vmem_limit_bytes is None:
        vmem_limit_bytes = default_limit

    in_bytes = jnp.dtype(tokens.dtype).itemsize
    out_bytes = out_dtype.itemsize
    if tile_m is None:
        tile_m = _choose_tile_m(M, D, O, in_bytes, out_bytes, use_scratch, budget)
    tile_m = max(8, _round_up(int(tile_m), 8))

    Mp = _round_up(M, tile_m)
    x = tokens.reshape(Y, M, D)
    if Mp != M:
        # Zero padding is harmless: zero rows give gate==0 (RMS_EPS > 0 keeps
        # rsqrt finite) and contribute 0; padded rows are sliced off below.
        x = jnp.pad(x, ((0, 0), (0, Mp - M), (0, 0)))

    # Fold the RMSNorm weight into the linear weight: the normalized activations
    # are only ever consumed by the projection, so xn is never materialized.
    wg = w.astype(jnp.float32) * gamma.astype(jnp.float32)[:, None]      # (D, O)
    bias_yod = jnp.transpose(bias, (1, 0, 2)).astype(jnp.float32)        # (Y, O, D)

    grid = (Mp // tile_m, Y)   # reduction (depth) axis last
    scratch_shapes = (
        [pltpu.VMEM((O, tile_m, D), jnp.float32)] if use_scratch else [])

    kernel = functools.partial(_grn_kernel, num_layers=Y)

    out = pl.pallas_call(
        kernel,
        out_shape=jax.ShapeDtypeStruct((O, Mp, D), out_dtype),
        grid_spec=pltpu.PrefetchScalarGridSpec(
            num_scalar_prefetch=0,
            grid=grid,
            in_specs=[
                pl.BlockSpec((1, tile_m, D), lambda i, y: (y, i, 0)),
                pl.BlockSpec((D, O), lambda i, y: (0, 0)),
                # bias is a few KiB: keep it fully resident (one DMA total).
                pl.BlockSpec((Y, O, D), lambda i, y: (0, 0, 0)),
            ],
            out_specs=pl.BlockSpec((O, tile_m, D), lambda i, y: (0, i, 0)),
            scratch_shapes=scratch_shapes,
        ),
        compiler_params=pltpu.CompilerParams(
            dimension_semantics=("parallel", "arbitrary"),
            vmem_limit_bytes=int(vmem_limit_bytes),
        ),
    )(x, wg, bias_yod)

    out = out[:, :M, :].reshape(O, B, N, D)
    if O == 1:
        out = out[0]
    return out


def grn_reference(tokens, gamma, w, bias):
    """Pure-JAX reference mirroring the PyTorch forward exactly."""
    x = tokens.astype(jnp.float32)
    ms = jnp.mean(x * x, axis=-1, keepdims=True)
    xn = x * jax.lax.rsqrt(ms + RMS_EPS) * gamma
    agg = jnp.maximum(
        jnp.einsum('ybnd,do->ybno', xn, w, precision='highest'), 0.0)   # (Y,B,N,O)
    agg = jnp.transpose(agg, (3, 0, 1, 2))                              # (O,Y,B,N)
    full = agg[..., None] + bias[:, :, None, None, :]                   # (O,Y,B,N,D)
    out = jnp.einsum('ybnd,oybnd->obnd', x, full, precision='highest')  # (O,B,N,D)
    if w.shape[1] == 1:
        out = out[0]
    return out.astype(tokens.dtype)


if __name__ == "__main__":
    root_key = jax.random.PRNGKey(0)

    def run_case(Y, B, N, D, O, tile_m, case_id, out_dtype=None, tol=1e-4):
        key = jax.random.fold_in(root_key, case_id)
        k_tok, k_w, k_b = jax.random.split(key, 3)
        tokens = jax.random.normal(k_tok, (Y, B, N, D), dtype=jnp.float32)
        # Parameters (module __init__ shapes). Values are non-zero so the
        # Linear/gate path is exercised (PyTorch init zeroes the Linear weight,
        # which would make the gate trivially 0).
        gamma = jnp.ones((D,), dtype=jnp.float32)                        # RMSNorm weight
        w = 0.05 * jax.random.normal(k_w, (D, O), dtype=jnp.float32)     # Linear weight^T
        bias = (jnp.ones((O, Y, D), jnp.float32)
                + 0.01 * jax.random.normal(k_b, (O, Y, D), dtype=jnp.float32))

        out = grn_forward(tokens, gamma, w, bias, tile_m=tile_m, out_dtype=out_dtype)
        out = jax.block_until_ready(out)
        ref = grn_reference(tokens, gamma, w, bias)
        if out_dtype is not None:
            ref = ref.astype(out_dtype)

        expected_shape = (B, N, D) if O == 1 else (O, B, N, D)
        assert out.shape == expected_shape, (out.shape, expected_shape)
        assert out.dtype == ref.dtype, (out.dtype, ref.dtype)
        err = float(jnp.max(jnp.abs(out.astype(jnp.float32) - ref.astype(jnp.float32))))
        assert jnp.allclose(out.astype(jnp.float32), ref.astype(jnp.float32),
                            atol=tol, rtol=tol), err

    # Case 1: lane-dense D (=128), M not divisible by the tile -> exercises
    # zero padding + the no-scratch (accumulate-in-output) f32 path.
    run_case(Y=4, B=2, N=200, D=128, O=1, tile_m=128, case_id=1)
    # Case 2: auto tile_m, multiple outputs, sub-128 D (correct, not lane dense).
    run_case(Y=3, B=2, N=64, D=32, O=2, tile_m=None, case_id=2)
    # Case 3: bf16 output -> f32 VMEM scratch accumulator path.
    run_case(Y=2, B=2, N=64, D=128, O=1, tile_m=None, case_id=3,
             out_dtype=jnp.bfloat16, tol=3e-2)
    # Case 4: single layer (Y == 1) early-exit path.
    run_case(Y=1, B=1, N=16, D=128, O=1, tile_m=None, case_id=4)

    print("KERNEL_OK")
</pallas_src>

<mosaic_0001>
module attributes {stable_mosaic.version = 11 : i64} {
  func.func @_grn_kernel(%arg0: i32, %arg1: i32, %arg2: memref<1x128x128xf32, #tpu.memory_space<vmem>>, %arg3: memref<128x1xf32, #tpu.memory_space<vmem>>, %arg4: memref<4x1x128xf32, #tpu.memory_space<vmem>>, %arg5: memref<1x128x128xf32, #tpu.memory_space<vmem>>) attributes {dimension_semantics = [#tpu.dimension_semantics<parallel>, #tpu.dimension_semantics<arbitrary>], iteration_bounds = array<i64: 4, 4>, scalar_prefetch = 0 : i64, scratch_operands = 0 : i64, tpu.core_type = #tpu.core_type<tc>, window_params = [{transform_indices = @transform_0, window_bounds = array<i64: 1, 128, 128>}, {pipeline_mode = #tpu.pipeline_mode<synchronous>, transform_indices = @transform_1, window_bounds = array<i64: 128, 1>}, {pipeline_mode = #tpu.pipeline_mode<synchronous>, transform_indices = @transform_2, window_bounds = array<i64: 4, 1, 128>}, {transform_indices = @transform_3, window_bounds = array<i64: 1, 128, 128>}]} {
    %c0 = arith.constant 0 : index
    %c0_0 = arith.constant 0 : index
    %c0_1 = arith.constant 0 : index
    %0 = vector.load %arg2[%c0, %c0_0, %c0_1] : memref<1x128x128xf32, #tpu.memory_space<vmem>>, vector<1x128x128xf32>
    %1 = vector.shape_cast %0 : vector<1x128x128xf32> to vector<128x128xf32>
    %2 = arith.mulf %1, %1 : vector<128x128xf32>
    %cst = arith.constant dense<0.000000e+00> : vector<128xf32>
    %3 = vector.multi_reduction <add>, %2, %cst [1] : vector<128x128xf32> to vector<128xf32>
    %4 = vector.shape_cast %3 : vector<128xf32> to vector<128x1xf32>
    %cst_2 = arith.constant 1.280000e+02 : f32
    %5 = vector.broadcast %cst_2 : f32 to vector<128x1xf32>
    %6 = arith.divf %4, %5 : vector<128x1xf32>
    %cst_3 = arith.constant 1.1920929E-7 : f32
    %7 = vector.broadcast %cst_3 : f32 to vector<128x1xf32>
    %8 = arith.addf %6, %7 : vector<128x1xf32>
    %9 = math.rsqrt %8 : vector<128x1xf32>
    %c0_4 = arith.constant 0 : index
    %c0_5 = arith.constant 0 : index
    %10 = vector.load %arg3[%c0_4, %c0_5] : memref<128x1xf32, #tpu.memory_space<vmem>>, vector<128x1xf32>
    %cst_6 = arith.constant dense<0.000000e+00> : vector<128x1xf32>
    %11 = tpu.matmul %1, %10, %cst_6 {dimension_numbers = #tpu.dot_dimension_numbers<[1], [0], [0], [1], [0, 0, 1, 1], [], []>} : vector<128x128xf32>, vector<128x1xf32>, vector<128x1xf32> -> vector<128x1xf32>
    %12 = arith.mulf %11, %9 : vector<128x1xf32>
    %cst_7 = arith.constant 0.000000e+00 : f32
    %13 = vector.broadcast %cst_7 : f32 to vector<128x1xf32>
    %14 = arith.maximumf %12, %13 : vector<128x1xf32>
    %15 = arith.index_cast %arg1 : i32 to index
    %c0_8 = arith.constant 0 : index
    %c0_9 = arith.constant 0 : index
    %16 = vector.load %arg4[%15, %c0_8, %c0_9] : memref<4x1x128xf32, #tpu.memory_space<vmem>>, vector<1x1x128xf32>
    %17 = vector.shape_cast %16 : vector<1x1x128xf32> to vector<1x128xf32>
    %18 = vector.shape_cast %17 : vector<1x128xf32> to vector<128xf32>
    %19 = vector.shape_cast %18 : vector<128xf32> to vector<1x128xf32>
    %20 = vector.broadcast %14 : vector<128x1xf32> to vector<128x128xf32>
    %21 = vector.broadcast %19 : vector<1x128xf32> to vector<128x128xf32>
    %22 = arith.addf %20, %21 : vector<128x128xf32>
    %23 = arith.mulf %1, %22 : vector<128x128xf32>
    %c0_i32 = arith.constant 0 : i32
    %24 = arith.cmpi eq, %arg1, %c0_i32 : i32
    %25 = arith.extui %24 : i1 to i32
    %c0_i32_10 = arith.constant 0 : i32
    %26 = arith.cmpi ne, %25, %c0_i32_10 : i32
    scf.if %26 {
      %c0_12 = arith.constant 0 : index
      %c0_13 = arith.constant 0 : index
      %c0_14 = arith.constant 0 : index
      %30 = vector.load %arg5[%c0_12, %c0_13, %c0_14] : memref<1x128x128xf32, #tpu.memory_space<vmem>>, vector<1x128x128xf32>
      %31 = vector.shape_cast %30 : vector<1x128x128xf32> to vector<128x128xf32>
      %32 = vector.shape_cast %23 : vector<128x128xf32> to vector<1x128x128xf32>
      tpu.vector_store %arg5[%c0_12, %c0_13, %c0_14], %32 {strides = array<i32>} : memref<1x128x128xf32, #tpu.memory_space<vmem>>, vector<1x128x128xf32>,
    } else {
    }
    %true = arith.constant true
    %27 = arith.xori %24, %true : i1
    %28 = arith.extui %27 : i1 to i32
    %c0_i32_11 = arith.constant 0 : i32
    %29 = arith.cmpi ne, %28, %c0_i32_11 : i32
    scf.if %29 {
      %c0_12 = arith.constant 0 : index
      %c0_13 = arith.constant 0 : index
      %c0_14 = arith.constant 0 : index
      %30 = vector.load %arg5[%c0_12, %c0_13, %c0_14] : memref<1x128x128xf32, #tpu.memory_space<vmem>>, vector<1x128x128xf32>
      %31 = vector.shape_cast %30 : vector<1x128x128xf32> to vector<128x128xf32>
      %32 = arith.addf %31, %23 : vector<128x128xf32>
      %c0_15 = arith.constant 0 : index
      %c0_16 = arith.constant 0 : index
      %c0_17 = arith.constant 0 : index
      %33 = vector.load %arg5[%c0_15, %c0_16, %c0_17] : memref<1x128x128xf32, #tpu.memory_space<vmem>>, vector<1x128x128xf32>
      %34 = vector.shape_cast %33 : vector<1x128x128xf32> to vector<128x128xf32>
      %35 = vector.shape_cast %32 : vector<128x128xf32> to vector<1x128x128xf32>
      tpu.vector_store %arg5[%c0_15, %c0_16, %c0_17], %35 {strides = array<i32>} : memref<1x128x128xf32, #tpu.memory_space<vmem>>, vector<1x128x128xf32>,
    } else {
    }
    return
  }
  func.func @transform_0(%arg0: i32, %arg1: i32) -> (i32, i32, i32) {
    %c0_i32 = arith.constant 0 : i32
    %c0_i32_0 = arith.constant 0 : i32
    return %arg1, %arg0, %c0_i32 : i32, i32, i32
  }
  func.func @transform_1(%arg0: i32, %arg1: i32) -> (i32, i32) {
    %c0_i32 = arith.constant 0 : i32
    %c0_i32_0 = arith.constant 0 : i32
    %c0_i32_1 = arith.constant 0 : i32
    return %c0_i32, %c0_i32_0 : i32, i32
  }
  func.func @transform_2(%arg0: i32, %arg1: i32) -> (i32, i32, i32) {
    %c0_i32 = arith.constant 0 : i32
    %c0_i32_0 = arith.constant 0 : i32
    %c0_i32_1 = arith.constant 0 : i32
    %c0_i32_2 = arith.constant 0 : i32
    return %c0_i32, %c0_i32_0, %c0_i32_1 : i32, i32, i32
  }
  func.func @transform_3(%arg0: i32, %arg1: i32) -> (i32, i32, i32) {
    %c0_i32 = arith.constant 0 : i32
    %c0_i32_0 = arith.constant 0 : i32
    %c0_i32_1 = arith.constant 0 : i32
    return %c0_i32, %arg0, %c0_i32_0 : i32, i32, i32
  }
}

</mosaic_0001>

<llo_original>
// kernel: tpu_custom_call.1
$region0: #{tpu_custom_call.1}
  #allocation0 [shape = 'u32[]', space=smem, size = 0x4, offset = 0x4, fixed_abs, tag = 'smem constant byte address 0x4 - core index']
  #allocation1 [shape = 'u32[72,128]{1,0:T(1,128)}', space=vmem, size = 0x9000, scoped, tag = 'internal scratch']
  %s0 = inlined_call_operand.hbm [shape: f32[4,512,128], index: 0, kind: input, shape index: {}]
  %s1 = inlined_call_operand.vmem [shape: f32[128,1], index: 1, kind: input, shape index: {}]
  %s2 = inlined_call_operand.vmem [shape: f32[4,1,128], index: 2, kind: input, shape index: {}]
  %s3 = inlined_call_operand.hbm [shape: f32[1,512,128], index: 3, kind: output, shape index: {}]
  %s4 = sld [smem:[#allocation0]]
  $region57: #{tpu_custom_call.1} parent=0
    _
  %s6 = ssub.s32 1, %s4
  %s7 = scalar_select 0, %s6, %s4
  $region1: #{tpu_custom_call.1} parent=0
    #allocation2 [shape = 'u8[131072]{0}', space=vmem, size = 0x20000, scoped, tag = 'input window, operand 0']
    #allocation3 [shape = 's32[2]{0}', space=sflag, size = 0x8, scoped, tag = 'scoped memory for tpu_custom_call.1']
    #allocation4 [shape = 's32[2]{0}', space=sflag, size = 0x8, scoped, tag = 'scoped memory for tpu_custom_call.1']
    #allocation5 [shape = 'u8[131072]{0}', space=vmem, size = 0x20000, scoped, tag = 'output window, operand 0']
    %8 = vsyncpa [#allocation3], 0
    %s9 = scalar_lea.sflag [#allocation3], 1
    %10 = vsyncpa %s9, 0
    %11 = vsyncpa [#allocation4], 0
    %s12 = scalar_lea.sflag [#allocation4], 1
    %13 = vsyncpa %s12, 0
    loop: start=0, step=1, limit=18
    $region2: #{tpu_custom_call.1} parent=1 // loop_pre_header
      _
    $region3: #{tpu_custom_call.1} parent=1 // loop_header
      %s15 = sphi 0, %s19
      %p16 = scmp.ge.s32.totalorder %s15, 18
      %s22 = sphi 0, %s34
      %s23 = sphi 0, %s30
      %s24 = sphi 0, %s22
      %s25 = sphi 0, %s23
      %s26 = sphi 0, %s24
      %s27 = sphi 0, %s25
      %s39 = sphi 0, %s41
      %s42 = sphi 0, %s39
      %s43 = sphi 0, %s42
      %s59 = sphi 0, %s43
      %s63 = sphi 0, %s63
      %s65 = sphi 0, %s63
      %s66 = sphi 0, %s65
      %s80 = sphi 0, %s66
      %s84 = sphi 0, %s84
      %s86 = sphi 0, %s84
      %s87 = sphi 0, %s86
      %s101 = sphi 0, %s87
      %s107 = sphi 0, %s109
      %s110 = sphi 0, %s107
      %s111 = sphi 0, %s110
      %s127 = sphi 0, %s111
    $region4: #{tpu_custom_call.1} parent=1 // loop_header_branch
      %18 = sbr.rel (%p16) target = $region8
    $region5: #{tpu_custom_call.1} parent=1 // loop_body
      %s20 = ssub.s32 %s15, 1
      %s21 = ssub.s32 %s15, 2
      %s28 = sadd.s32 1, %s23
      %p29 = scmp.ge.s32.totalorder %s28, 4
      %s30 = scalar_select %p29, 0, %s28
      %s31 = sadd.s32 1, %s22
      %s32 = scalar_select %p29, %s31, %s22
      %p33 = scmp.ge.s32.totalorder %s32, 4
      %s34 = scalar_select %p33, 0, %s32
      %s35 = ssub.s32 %s23, %s30
      %s36 = ssub.s32 %s22, %s34
      %s37 = sor.u32 %s35, %s36
      %p38 = scmp.eq.s32.totalorder %s37, 0
      %s40 = sadd.s32 %s39, 1
      %s41 = scalar_select %p38, %s39, %s40
      %p44 = pneg %p38
      %p45 = scmp.eq.s32.totalorder %s15, 15
      %p46 = por %p44, %p45
      %p47 = scmp.ne.s32.totalorder %s39, %s42
      %p48 = scmp.eq.s32.totalorder %s15, 0
      %p49 = por %p47, %p48
      %p50 = scmp.ne.s32.totalorder %s39, %s42
      %p51 = scmp.eq.s32.totalorder %s20, 15
      %p52 = por %p50, %p51
      %p53 = scmp.ne.s32.totalorder %s42, %s43
      %p54 = scmp.eq.s32.totalorder %s20, 0
      %p55 = por %p53, %p54
      %p56 = scmp.ne.s32.totalorder %s42, %s43
      %p57 = scmp.eq.s32.totalorder %s21, 15
      %p58 = por %p56, %p57
      %p60 = scmp.ne.s32.totalorder %s43, %s59
      %p61 = scmp.eq.s32.totalorder %s21, 0
      %p62 = por %p60, %p61
      %s64 = sadd.s32 %s63, 1
      %p67 = scmp.eq.s32.totalorder %s15, 15
      %p68 = scmp.ne.s32.totalorder %s63, %s65
      %p69 = scmp.eq.s32.totalorder %s15, 0
      %p70 = por %p68, %p69
      %p71 = scmp.ne.s32.totalorder %s63, %s65
      %p72 = scmp.eq.s32.totalorder %s20, 15
      %p73 = por %p71, %p72
      %p74 = scmp.ne.s32.totalorder %s65, %s66
      %p75 = scmp.eq.s32.totalorder %s20, 0
      %p76 = por %p74, %p75
      %p77 = scmp.ne.s32.totalorder %s65, %s66
      %p78 = scmp.eq.s32.totalorder %s21, 15
      %p79 = por %p77, %p78
      %p81 = scmp.ne.s32.totalorder %s66, %s80
      %p82 = scmp.eq.s32.totalorder %s21, 0
      %p83 = por %p81, %p82
      %s85 = sadd.s32 %s84, 1
      %p88 = scmp.eq.s32.totalorder %s15, 15
      %p89 = scmp.ne.s32.totalorder %s84, %s86
      %p90 = scmp.eq.s32.totalorder %s15, 0
      %p91 = por %p89, %p90
      %p92 = scmp.ne.s32.totalorder %s84, %s86
      %p93 = scmp.eq.s32.totalorder %s20, 15
      %p94 = por %p92, %p93
      %p95 = scmp.ne.s32.totalorder %s86, %s87
      %p96 = scmp.eq.s32.totalorder %s20, 0
      %p97 = por %p95, %p96
      %p98 = scmp.ne.s32.totalorder %s86, %s87
      %p99 = scmp.eq.s32.totalorder %s21, 15
      %p100 = por %p98, %p99
      %p102 = scmp.ne.s32.totalorder %s87, %s101
      %p103 = scmp.eq.s32.totalorder %s21, 0
      %p104 = por %p102, %p103
      %s105 = ssub.s32 %s22, %s34
      %p106 = scmp.eq.s32.totalorder %s105, 0
      %s108 = sadd.s32 %s107, 1
      %s109 = scalar_select %p106, %s107, %s108
      %p112 = pneg %p106
      %p113 = scmp.eq.s32.totalorder %s15, 15
      %p114 = por %p112, %p113
      %p115 = scmp.ne.s32.totalorder %s107, %s110
      %p116 = scmp.eq.s32.totalorder %s15, 0
      %p117 = por %p115, %p116
      %p118 = scmp.ne.s32.totalorder %s107, %s110
      %p119 = scmp.eq.s32.totalorder %s20, 15
      %p120 = por %p118, %p119
      %p121 = scmp.ne.s32.totalorder %s110, %s111
      %p122 = scmp.eq.s32.totalorder %s20, 0
      %p123 = por %p121, %p122
      %p124 = scmp.ne.s32.totalorder %s110, %s111
      %p125 = scmp.eq.s32.totalorder %s21, 15
      %p126 = por %p124, %p125
      %p128 = scmp.ne.s32.totalorder %s111, %s127
      %p129 = scmp.eq.s32.totalorder %s21, 0
      %p130 = por %p128, %p129
      %p131 = scmp.le.s32.totalorder 1, %s15
      %p132 = scmp.lt.s32.totalorder %s15, 17
      %p133 = pnand %p131, %p132
      %p134 = pneg %p133
      // Predicated region
      $region9: #{tpu_custom_call.1} parent=5 // pred_check
        _
      $region10: #{tpu_custom_call.1} parent=5 // pred_check_branch
        %136 = sbr.rel (%p133) target = $region12
      $region11: #{tpu_custom_call.1} parent=5 // pred_region
        %s137 = ssub.s32 %s15, 1
        // Predicated region
        $region13: #{tpu_custom_call.1} parent=11 // pred_check
          %p138 = pneg %p76
        $region14: #{tpu_custom_call.1} parent=11 // pred_check_branch
          %140 = sbr.rel (%p138) target = $region16
        $region15: #{tpu_custom_call.1} parent=11 // pred_region
          _
        $region16: #{tpu_custom_call.1} parent=11 // pred_fallthru
          _
        // Predicated region
        $region17: #{tpu_custom_call.1} parent=11 // pred_check
          %p141 = pneg %p97
        $region18: #{tpu_custom_call.1} parent=11 // pred_check_branch
          %143 = sbr.rel (%p141) target = $region20
        $region19: #{tpu_custom_call.1} parent=11 // pred_region
          _
        $region20: #{tpu_custom_call.1} parent=11 // pred_fallthru
          _
      $region12: #{tpu_custom_call.1} parent=5 // pred_fallthru
        _
      %p144 = scmp.lt.s32.totalorder %s15, 16
      // Predicated region
      $region21: #{tpu_custom_call.1} parent=5 // pred_check
        %p145 = pneg %p144
      $region22: #{tpu_custom_call.1} parent=5 // pred_check_branch
        %147 = sbr.rel (%p145) target = $region24
      $region23: #{tpu_custom_call.1} parent=5 // pred_region
        // Predicated region
        $region25: #{tpu_custom_call.1} parent=23 // pred_check
          %p148 = pneg %p49
        $region26: #{tpu_custom_call.1} parent=23 // pred_check_branch
          %150 = sbr.rel (%p148) target = $region28
        $region27: #{tpu_custom_call.1} parent=23 // pred_region
          %s151 = sand.u32 %s39, 1
          %s152 = scalar_lea.sflag [#allocation3], %s151
          %s153 = sand.u32 %s39, 1
          %s154 = smul.addr %s153, 128
          %s155 = scalar_lea.vmem [#allocation2], %s154
          %s156 = smul.u32 16, %s22
          %158 = vsyncadd %s152, 0
          %s159 = smul.addr %s23, 64
          %s160 = sadd.s32 %s156, %s159
          %s161 = smul.addr %s160, 8
          %s162 = scalar_lea.hbm %s0, %s161
          %s163 = sshll.u32 %s162, 4
          %s164 = int_to_ptr.hbm [resolvable:$true] %s163
          %s165 = sshll.u32 %s155, 4
          %s166 = int_to_ptr.vmem [resolvable:$true] %s165
          %171 = dma.hbm_to_vmem [thread:$0]  %s164, 2048, %s166, %s152, 128, 128, 8
        $region28: #{tpu_custom_call.1} parent=23 // pred_fallthru
          _
      $region24: #{tpu_custom_call.1} parent=5 // pred_fallthru
        _
      %p172 = scmp.le.s32.totalorder 1, %s15
      %p173 = scmp.lt.s32.totalorder %s15, 17
      %p174 = pnand %p172, %p173
      %p175 = pneg %p174
      // Predicated region
      $region29: #{tpu_custom_call.1} parent=5 // pred_check
        _
      $region30: #{tpu_custom_call.1} parent=5 // pred_check_branch
        %177 = sbr.rel (%p174) target = $region32
      $region31: #{tpu_custom_call.1} parent=5 // pred_region
        %s178 = ssub.s32 %s15, 1
        %s179 = sand.u32 %s42, 1
        %s180 = scalar_lea.sflag [#allocation3], %s179
        %s181 = sand.u32 %s42, 1
        %s182 = smul.addr %s181, 128
        %s183 = scalar_lea.vmem [#allocation2], %s182
        // Predicated region
        $region33: #{tpu_custom_call.1} parent=31 // pred_check
          %p184 = pneg %p55
        $region34: #{tpu_custom_call.1} parent=31 // pred_check_branch
          %186 = sbr.rel (%p184) target = $region36
        $region35: #{tpu_custom_call.1} parent=31 // pred_region
          %188 = dma.done %s180, 2048
        $region36: #{tpu_custom_call.1} parent=31 // pred_fallthru
          _
        %s189 = sand.u32 %s42, 1
        %s190 = scalar_lea.sflag [#allocation3], %s189
        %s191 = sand.u32 %s42, 1
        %s192 = smul.addr %s191, 128
        %s193 = scalar_lea.vmem [#allocation2], %s192
        %p194 = pneg %p55
        %p195 = pneg %p52
        %p196 = pneg %p76
        %p197 = pneg %p73
        %p198 = pneg %p97
        %p199 = pneg %p94
        %p200 = pneg %p123
        %p201 = pneg %p120
        %s202 = sand.u32 %s110, 1
        %s203 = scalar_lea.sflag [#allocation4], %s202
        %s204 = sand.u32 %s110, 1
        %s205 = smul.addr %s204, 128
        %s206 = scalar_lea.vmem [#allocation5], %s205
        %s207 = smul.u32 16, %s24
        %s208 = smul.u32 16, %s24
        %v209 = vld [vmem:[%s183] sm:$0xff]
        %v210 = vld [vmem:[%s183 + $0x8] sm:$0xff]
        %v211 = vld [vmem:[%s183 + $0x10] sm:$0xff]
        %v212 = vld [vmem:[%s183 + $0x18] sm:$0xff]
        %v213 = vld [vmem:[%s183 + $0x20] sm:$0xff]
        %v214 = vld [vmem:[%s183 + $0x28] sm:$0xff]
        %v215 = vld [vmem:[%s183 + $0x30] sm:$0xff]
        %v216 = vld [vmem:[%s183 + $0x38] sm:$0xff]
        %v217 = vld [vmem:[%s183 + $0x40] sm:$0xff]
        %v218 = vld [vmem:[%s183 + $0x48] sm:$0xff]
        %v219 = vld [vmem:[%s183 + $0x50] sm:$0xff]
        %v220 = vld [vmem:[%s183 + $0x58] sm:$0xff]
        %v221 = vld [vmem:[%s183 + $0x60] sm:$0xff]
        %v222 = vld [vmem:[%s183 + $0x68] sm:$0xff]
        %v223 = vld [vmem:[%s183 + $0x70] sm:$0xff]
        %v224 = vld [vmem:[%s183 + $0x78] sm:$0xff]
        %v225 = vmul.f32 %v209, %v209
        %v226 = vmul.f32 %v210, %v210
        %v227 = vmul.f32 %v211, %v211
        %v228 = vmul.f32 %v212, %v212
        %v229 = vmul.f32 %v213, %v213
        %v230 = vmul.f32 %v214, %v214
        %v231 = vmul.f32 %v215, %v215
        %v232 = vmul.f32 %v216, %v216
        %v233 = vmul.f32 %v217, %v217
        %v234 = vmul.f32 %v218, %v218
        %v235 = vmul.f32 %v219, %v219
        %v236 = vmul.f32 %v220, %v220
        %v237 = vmul.f32 %v221, %v221
        %v238 = vmul.f32 %v222, %v222
        %v239 = vmul.f32 %v223, %v223
        %v240 = vmul.f32 %v224, %v224
        %241 = vadd.xlane.f32.xlu0 %v225
        %v242 = vpop.xlane.xlu0 %241
        %243 = vadd.xlane.f32.xlu0 %v226
        %v244 = vpop.xlane.xlu0 %243
        %245 = vadd.xlane.f32.xlu0 %v227
        %v246 = vpop.xlane.xlu0 %245
        %247 = vadd.xlane.f32.xlu0 %v228
        %v248 = vpop.xlane.xlu0 %247
        %249 = vadd.xlane.f32.xlu0 %v229
        %v250 = vpop.xlane.xlu0 %249
        %251 = vadd.xlane.f32.xlu0 %v230
        %v252 = vpop.xlane.xlu0 %251
        %253 = vadd.xlane.f32.xlu0 %v231
        %v254 = vpop.xlane.xlu0 %253
        %255 = vadd.xlane.f32.xlu0 %v232
        %v256 = vpop.xlane.xlu0 %255
        %257 = vadd.xlane.f32.xlu0 %v233
        %v258 = vpop.xlane.xlu0 %257
        %259 = vadd.xlane.f32.xlu0 %v234
        %v260 = vpop.xlane.xlu0 %259
        %261 = vadd.xlane.f32.xlu0 %v235
        %v262 = vpop.xlane.xlu0 %261
        %263 = vadd.xlane.f32.xlu0 %v236
        %v264 = vpop.xlane.xlu0 %263
        %265 = vadd.xlane.f32.xlu0 %v237
        %v266 = vpop.xlane.xlu0 %265
        %267 = vadd.xlane.f32.xlu0 %v238
        %v268 = vpop.xlane.xlu0 %267
        %269 = vadd.xlane.f32.xlu0 %v239
        %v270 = vpop.xlane.xlu0 %269
        %271 = vadd.xlane.f32.xlu0 %v240
        %v272 = vpop.xlane.xlu0 %271
        %v273 = vrcp.pop 128.0
        %v274 = vmul.f32 128.0, %v273
        %v275 = vsub.f32 1.0, %v274
        %v276 = vmul.f32 %v273, %v275
        %v277 = vadd.f32 %v273, %v276
        %vm278 = vweird.f32 %v273
        %v279 = vsel %vm278, %v273, %v277
        %v280 = vmul.f32 %v242, %v279
        %v281 = vmul.f32 %v244, %v279
        %v282 = vmul.f32 %v246, %v279
        %v283 = vmul.f32 %v248, %v279
        %v284 = vmul.f32 %v250, %v279
        %v285 = vmul.f32 %v252, %v279
        %v286 = vmul.f32 %v254, %v279
        %v287 = vmul.f32 %v256, %v279
        %v288 = vmul.f32 %v258, %v279
        %v289 = vmul.f32 %v260, %v279
        %v290 = vmul.f32 %v262, %v279
        %v291 = vmul.f32 %v264, %v279
        %v292 = vmul.f32 %v266, %v279
        %v293 = vmul.f32 %v268, %v279
        %v294 = vmul.f32 %v270, %v279
        %v295 = vmul.f32 %v272, %v279
        %v296 = vadd.f32 %v280, 1.1920929e-07
        %v297 = vadd.f32 %v281, 1.1920929e-07
        %v298 = vadd.f32 %v282, 1.1920929e-07
        %v299 = vadd.f32 %v283, 1.1920929e-07
        %v300 = vadd.f32 %v284, 1.1920929e-07
        %v301 = vadd.f32 %v285, 1.1920929e-07
        %v302 = vadd.f32 %v286, 1.1920929e-07
        %v303 = vadd.f32 %v287, 1.1920929e-07
        %v304 = vadd.f32 %v288, 1.1920929e-07
        %v305 = vadd.f32 %v289, 1.1920929e-07
        %v306 = vadd.f32 %v290, 1.1920929e-07
        %v307 = vadd.f32 %v291, 1.1920929e-07
        %v308 = vadd.f32 %v292, 1.1920929e-07
        %v309 = vadd.f32 %v293, 1.1920929e-07
        %v310 = vadd.f32 %v294, 1.1920929e-07
        %v311 = vadd.f32 %v295, 1.1920929e-07
        %v312 = vrsqrt.pop %v296
        %v313 = vmul.f32 %v312, %v296
        %v314 = vmul.f32 %v313, %v312
        %v315 = vmul.f32 0.5, %v314
        %v316 = vsub.f32 1.5, %v315
        %v317 = vmul.f32 %v312, %v316
        %vm318 = vweird.f32 %v296
        %vm319 = vweird.f32 %v312
        %vm320 = vmor %vm318, %vm319
        %v321 = vsel %vm320, %v312, %v317
        %v322 = vrsqrt.pop %v297
        %v323 = vmul.f32 %v322, %v297
        %v324 = vmul.f32 %v323, %v322
        %v325 = vmul.f32 0.5, %v324
        %v326 = vsub.f32 1.5, %v325
        %v327 = vmul.f32 %v322, %v326
        %vm328 = vweird.f32 %v297
        %vm329 = vweird.f32 %v322
        %vm330 = vmor %vm328, %vm329
        %v331 = vsel %vm330, %v322, %v327
        %v332 = vrsqrt.pop %v298
        %v333 = vmul.f32 %v332, %v298
        %v334 = vmul.f32 %v333, %v332
        %v335 = vmul.f32 0.5, %v334
        %v336 = vsub.f32 1.5, %v335
        %v337 = vmul.f32 %v332, %v336
        %vm338 = vweird.f32 %v298
        %vm339 = vweird.f32 %v332
        %vm340 = vmor %vm338, %vm339
        %v341 = vsel %vm340, %v332, %v337
        %v342 = vrsqrt.pop %v299
        %v343 = vmul.f32 %v342, %v299
        %v344 = vmul.f32 %v343, %v342
        %v345 = vmul.f32 0.5, %v344
        %v346 = vsub.f32 1.5, %v345
        %v347 = vmul.f32 %v342, %v346
        %vm348 = vweird.f32 %v299
        %vm349 = vweird.f32 %v342
        %vm350 = vmor %vm348, %vm349
        %v351 = vsel %vm350, %v342, %v347
        %v352 = vrsqrt.pop %v300
        %v353 = vmul.f32 %v352, %v300
        %v354 = vmul.f32 %v353, %v352
        %v355 = vmul.f32 0.5, %v354
        %v356 = vsub.f32 1.5, %v355
        %v357 = vmul.f32 %v352, %v356
        %vm358 = vweird.f32 %v300
        %vm359 = vweird.f32 %v352
        %vm360 = vmor %vm358, %vm359
        %v361 = vsel %vm360, %v352, %v357
        %v362 = vrsqrt.pop %v301
        %v363 = vmul.f32 %v362, %v301
        %v364 = vmul.f32 %v363, %v362
        %v365 = vmul.f32 0.5, %v364
        %v366 = vsub.f32 1.5, %v365
        %v367 = vmul.f32 %v362, %v366
        %vm368 = vweird.f32 %v301
        %vm369 = vweird.f32 %v362
        %vm370 = vmor %vm368, %vm369
        %v371 = vsel %vm370, %v362, %v367
        %v372 = vrsqrt.pop %v302
        %v373 = vmul.f32 %v372, %v302
        %v374 = vmul.f32 %v373, %v372
        %v375 = vmul.f32 0.5, %v374
        %v376 = vsub.f32 1.5, %v375
        %v377 = vmul.f32 %v372, %v376
        %vm378 = vweird.f32 %v302
        %vm379 = vweird.f32 %v372
        %vm380 = vmor %vm378, %vm379
        %v381 = vsel %vm380, %v372, %v377
        %v382 = vrsqrt.pop %v303
        %v383 = vmul.f32 %v382, %v303
        %v384 = vmul.f32 %v383, %v382
        %v385 = vmul.f32 0.5, %v384
        %v386 = vsub.f32 1.5, %v385
        %v387 = vmul.f32 %v382, %v386
        %vm388 = vweird.f32 %v303
        %vm389 = vweird.f32 %v382
        %vm390 = vmor %vm388, %vm389
        %v391 = vsel %vm390, %v382, %v387
        %v392 = vrsqrt.pop %v304
        %v393 = vmul.f32 %v392, %v304
        %v394 = vmul.f32 %v393, %v392
        %v395 = vmul.f32 0.5, %v394
        %v396 = vsub.f32 1.5, %v395
        %v397 = vmul.f32 %v392, %v396
        %vm398 = vweird.f32 %v304
        %vm399 = vweird.f32 %v392
        %vm400 = vmor %vm398, %vm399
        %v401 = vsel %vm400, %v392, %v397
        %v402 = vrsqrt.pop %v305
        %v403 = vmul.f32 %v402, %v305
        %v404 = vmul.f32 %v403, %v402
        %v405 = vmul.f32 0.5, %v404
        %v406 = vsub.f32 1.5, %v405
        %v407 = vmul.f32 %v402, %v406
        %vm408 = vweird.f32 %v305
        %vm409 = vweird.f32 %v402
        %vm410 = vmor %vm408, %vm409
        %v411 = vsel %vm410, %v402, %v407
        %v412 = vrsqrt.pop %v306
        %v413 = vmul.f32 %v412, %v306
        %v414 = vmul.f32 %v413, %v412
        %v415 = vmul.f32 0.5, %v414
        %v416 = vsub.f32 1.5, %v415
        %v417 = vmul.f32 %v412, %v416
        %vm418 = vweird.f32 %v306
        %vm419 = vweird.f32 %v412
        %vm420 = vmor %vm418, %vm419
        %v421 = vsel %vm420, %v412, %v417
        %v422 = vrsqrt.pop %v307
        %v423 = vmul.f32 %v422, %v307
        %v424 = vmul.f32 %v423, %v422
        %v425 = vmul.f32 0.5, %v424
        %v426 = vsub.f32 1.5, %v425
        %v427 = vmul.f32 %v422, %v426
        %vm428 = vweird.f32 %v307
        %vm429 = vweird.f32 %v422
        %vm430 = vmor %vm428, %vm429
        %v431 = vsel %vm430, %v422, %v427
        %v432 = vrsqrt.pop %v308
        %v433 = vmul.f32 %v432, %v308
        %v434 = vmul.f32 %v433, %v432
        %v435 = vmul.f32 0.5, %v434
        %v436 = vsub.f32 1.5, %v435
        %v437 = vmul.f32 %v432, %v436
        %vm438 = vweird.f32 %v308
        %vm439 = vweird.f32 %v432
        %vm440 = vmor %vm438, %vm439
        %v441 = vsel %vm440, %v432, %v437
        %v442 = vrsqrt.pop %v309
        %v443 = vmul.f32 %v442, %v309
        %v444 = vmul.f32 %v443, %v442
        %v445 = vmul.f32 0.5, %v444
        %v446 = vsub.f32 1.5, %v445
        %v447 = vmul.f32 %v442, %v446
        %vm448 = vweird.f32 %v309
        %vm449 = vweird.f32 %v442
        %vm450 = vmor %vm448, %vm449
        %v451 = vsel %vm450, %v442, %v447
        %v452 = vrsqrt.pop %v310
        %v453 = vmul.f32 %v452, %v310
        %v454 = vmul.f32 %v453, %v452
        %v455 = vmul.f32 0.5, %v454
        %v456 = vsub.f32 1.5, %v455
        %v457 = vmul.f32 %v452, %v456
        %vm458 = vweird.f32 %v310
        %vm459 = vweird.f32 %v452
        %vm460 = vmor %vm458, %vm459
        %v461 = vsel %vm460, %v452, %v457
        %v462 = vrsqrt.pop %v311
        %v463 = vmul.f32 %v462, %v311
        %v464 = vmul.f32 %v463, %v462
        %v465 = vmul.f32 0.5, %v464
        %v466 = vsub.f32 1.5, %v465
        %v467 = vmul.f32 %v462, %v466
        %vm468 = vweird.f32 %v311
        %vm469 = vweird.f32 %v462
        %vm470 = vmor %vm468, %vm469
        %v471 = vsel %vm470, %v462, %v467
        %v472 = vld [vmem:[%s1] sm:$0xff]
        %v473 = vld [vmem:[%s1 + $0x8] sm:$0xff]
        %v474 = vld [vmem:[%s1 + $0x10] sm:$0xff]
        %v475 = vld [vmem:[%s1 + $0x18] sm:$0xff]
        %v476 = vld [vmem:[%s1 + $0x20] sm:$0xff]
        %v477 = vld [vmem:[%s1 + $0x28] sm:$0xff]
        %v478 = vld [vmem:[%s1 + $0x30] sm:$0xff]
        %v479 = vld [vmem:[%s1 + $0x38] sm:$0xff]
        %v480 = vld [vmem:[%s1 + $0x40] sm:$0xff]
        %v481 = vld [vmem:[%s1 + $0x48] sm:$0xff]
        %v482 = vld [vmem:[%s1 + $0x50] sm:$0xff]
        %v483 = vld [vmem:[%s1 + $0x58] sm:$0xff]
        %v484 = vld [vmem:[%s1 + $0x60] sm:$0xff]
        %v485 = vld [vmem:[%s1 + $0x68] sm:$0xff]
        %v486 = vld [vmem:[%s1 + $0x70] sm:$0xff]
        %v487 = vld [vmem:[%s1 + $0x78] sm:$0xff]
        %488 = vmatpush.msra.mxu0 %v487
        %489 = vmatpush.msra.mxu0 %v486
        %490 = vmatpush.msra.mxu0 %v485
        %491 = vmatpush.msra.mxu0 %v484
        %492 = vmatpush.msra.mxu0 %v483
        %493 = vmatpush.msra.mxu0 %v482
        %494 = vmatpush.msra.mxu0 %v481
        %495 = vmatpush.msra.mxu0 %v480
        %496 = vmatpush.msra.mxu0 %v479
        %497 = vmatpush.msra.mxu0 %v478
        %498 = vmatpush.msra.mxu0 %v477
        %499 = vmatpush.msra.mxu0 %v476
        %500 = vmatpush.msra.mxu0 %v475
        %501 = vmatpush.msra.mxu0 %v474
        %502 = vmatpush.msra.mxu0 %v473
        %503 = vmatpush.msra.mxu0 %v472
        %504 = vmatmul.f32.gmra.mxu0 %v209
        %v505 = vpop.f32.mrf.mxu0
        %v506 = vadd.f32 0.0, %v505
        %507 = vmatmul.f32.gmra.mxu0 %v210
        %v508 = vpop.f32.mrf.mxu0
        %v509 = vadd.f32 0.0, %v508
        %510 = vmatmul.f32.gmra.mxu0 %v211
        %v511 = vpop.f32.mrf.mxu0
        %v512 = vadd.f32 0.0, %v511
        %513 = vmatmul.f32.gmra.mxu0 %v212
        %v514 = vpop.f32.mrf.mxu0
        %v515 = vadd.f32 0.0, %v514
        %516 = vmatmul.f32.gmra.mxu0 %v213
        %v517 = vpop.f32.mrf.mxu0
        %v518 = vadd.f32 0.0, %v517
        %519 = vmatmul.f32.gmra.mxu0 %v214
        %v520 = vpop.f32.mrf.mxu0
        %v521 = vadd.f32 0.0, %v520
        %522 = vmatmul.f32.gmra.mxu0 %v215
        %v523 = vpop.f32.mrf.mxu0
        %v524 = vadd.f32 0.0, %v523
        %525 = vmatmul.f32.gmra.mxu0 %v216
        %v526 = vpop.f32.mrf.mxu0
        %v527 = vadd.f32 0.0, %v526
        %528 = vmatmul.f32.gmra.mxu0 %v217
        %v529 = vpop.f32.mrf.mxu0
        %v530 = vadd.f32 0.0, %v529
        %531 = vmatmul.f32.gmra.mxu0 %v218
        %v532 = vpop.f32.mrf.mxu0
        %v533 = vadd.f32 0.0, %v532
        %534 = vmatmul.f32.gmra.mxu0 %v219
        %v535 = vpop.f32.mrf.mxu0
        %v536 = vadd.f32 0.0, %v535
        %537 = vmatmul.f32.gmra.mxu0 %v220
        %v538 = vpop.f32.mrf.mxu0
        %v539 = vadd.f32 0.0, %v538
        %540 = vmatmul.f32.gmra.mxu0 %v221
        %v541 = vpop.f32.mrf.mxu0
        %v542 = vadd.f32 0.0, %v541
        %543 = vmatmul.f32.gmra.mxu0 %v222
        %v544 = vpop.f32.mrf.mxu0
        %v545 = vadd.f32 0.0, %v544
        %546 = vmatmul.f32.gmra.mxu0 %v223
        %v547 = vpop.f32.mrf.mxu0
        %v548 = vadd.f32 0.0, %v547
        %549 = vmatmul.f32.gmra.mxu0 %v224
        %v550 = vpop.f32.mrf.mxu0
        %v551 = vadd.f32 0.0, %v550
        %552 = vdwg.mxu0
        %v553 = vmul.f32 %v506, %v321
        %v554 = vmul.f32 %v509, %v331
        %v555 = vmul.f32 %v512, %v341
        %v556 = vmul.f32 %v515, %v351
        %v557 = vmul.f32 %v518, %v361
        %v558 = vmul.f32 %v521, %v371
        %v559 = vmul.f32 %v524, %v381
        %v560 = vmul.f32 %v527, %v391
        %v561 = vmul.f32 %v530, %v401
        %v562 = vmul.f32 %v533, %v411
        %v563 = vmul.f32 %v536, %v421
        %v564 = vmul.f32 %v539, %v431
        %v565 = vmul.f32 %v542, %v441
        %v566 = vmul.f32 %v545, %v451
        %v567 = vmul.f32 %v548, %v461
        %v568 = vmul.f32 %v551, %v471
        %v569 = vmax.f32 %v553, 0.0
        %v570 = vmax.f32 %v554, 0.0
        %v571 = vmax.f32 %v555, 0.0
        %v572 = vmax.f32 %v556, 0.0
        %v573 = vmax.f32 %v557, 0.0
        %v574 = vmax.f32 %v558, 0.0
        %v575 = vmax.f32 %v559, 0.0
        %v576 = vmax.f32 %v560, 0.0
        %v577 = vmax.f32 %v561, 0.0
        %v578 = vmax.f32 %v562, 0.0
        %v579 = vmax.f32 %v563, 0.0
        %v580 = vmax.f32 %v564, 0.0
        %v581 = vmax.f32 %v565, 0.0
        %v582 = vmax.f32 %v566, 0.0
        %v583 = vmax.f32 %v567, 0.0
        %v584 = vmax.f32 %v568, 0.0
        %s585 = scalar_lea.vmem %s2, %s25
        %v586 = vld [vmem:[%s585] sm:$0x1]
        %588 = vset.pattern.permute.xlu0 0
        %589 = vperm.xlu0 %588, %v569
        %v590 = vpop.permute.xlu0 %589
        %593 = vset.pattern.permute.xlu0 0
        %594 = vperm.xlu0 %593, %v570
        %v595 = vpop.permute.xlu0 %594
        %598 = vset.pattern.permute.xlu0 0
        %599 = vperm.xlu0 %598, %v571
        %v600 = vpop.permute.xlu0 %599
        %603 = vset.pattern.permute.xlu0 0
        %604 = vperm.xlu0 %603, %v572
        %v605 = vpop.permute.xlu0 %604
        %608 = vset.pattern.permute.xlu0 0
        %609 = vperm.xlu0 %608, %v573
        %v610 = vpop.permute.xlu0 %609
        %613 = vset.pattern.permute.xlu0 0
        %614 = vperm.xlu0 %613, %v574
        %v615 = vpop.permute.xlu0 %614
        %618 = vset.pattern.permute.xlu0 0
        %619 = vperm.xlu0 %618, %v575
        %v620 = vpop.permute.xlu0 %619
        %623 = vset.pattern.permute.xlu0 0
        %624 = vperm.xlu0 %623, %v576
        %v625 = vpop.permute.xlu0 %624
        %628 = vset.pattern.permute.xlu0 0
        %629 = vperm.xlu0 %628, %v577
        %v630 = vpop.permute.xlu0 %629
        %633 = vset.pattern.permute.xlu0 0
        %634 = vperm.xlu0 %633, %v578
        %v635 = vpop.permute.xlu0 %634
        %638 = vset.pattern.permute.xlu0 0
        %639 = vperm.xlu0 %638, %v579
        %v640 = vpop.permute.xlu0 %639
        %643 = vset.pattern.permute.xlu0 0
        %644 = vperm.xlu0 %643, %v580
        %v645 = vpop.permute.xlu0 %644
        %648 = vset.pattern.permute.xlu0 0
        %649 = vperm.xlu0 %648, %v581
        %v650 = vpop.permute.xlu0 %649
        %653 = vset.pattern.permute.xlu0 0
        %654 = vperm.xlu0 %653, %v582
        %v655 = vpop.permute.xlu0 %654
        %658 = vset.pattern.permute.xlu0 0
        %659 = vperm.xlu0 %658, %v583
        %v660 = vpop.permute.xlu0 %659
        %663 = vset.pattern.permute.xlu0 0
        %664 = vperm.xlu0 %663, %v584
        %v665 = vpop.permute.xlu0 %664
        %v668 = vperm.slane %v586, 0
        %v670 = vadd.f32 %v590, %v668
        %v671 = vadd.f32 %v595, %v668
        %v672 = vadd.f32 %v600, %v668
        %v673 = vadd.f32 %v605, %v668
        %v674 = vadd.f32 %v610, %v668
        %v675 = vadd.f32 %v615, %v668
        %v676 = vadd.f32 %v620, %v668
        %v677 = vadd.f32 %v625, %v668
        %v678 = vadd.f32 %v630, %v668
        %v679 = vadd.f32 %v635, %v668
        %v680 = vadd.f32 %v640, %v668
        %v681 = vadd.f32 %v645, %v668
        %v682 = vadd.f32 %v650, %v668
        %v683 = vadd.f32 %v655, %v668
        %v684 = vadd.f32 %v660, %v668
        %v685 = vadd.f32 %v665, %v668
        %v686 = vmul.f32 %v209, %v670
        %v687 = vmul.f32 %v210, %v671
        %v688 = vmul.f32 %v211, %v672
        %v689 = vmul.f32 %v212, %v673
        %v690 = vmul.f32 %v213, %v674
        %v691 = vmul.f32 %v214, %v675
        %v692 = vmul.f32 %v215, %v676
        %v693 = vmul.f32 %v216, %v677
        %v694 = vmul.f32 %v217, %v678
        %v695 = vmul.f32 %v218, %v679
        %v696 = vmul.f32 %v219, %v680
        %v697 = vmul.f32 %v220, %v681
        %v698 = vmul.f32 %v221, %v682
        %v699 = vmul.f32 %v222, %v683
        %v700 = vmul.f32 %v223, %v684
        %v701 = vmul.f32 %v224, %v685
        %p702 = scmp.eq.s32.totalorder %s25, 0
        // Predicated region
        $region37: #{tpu_custom_call.1} parent=31 // pred_check
          %p703 = pneg %p702
        $region38: #{tpu_custom_call.1} parent=31 // pred_check_branch
          %705 = sbr.rel (%p703) target = $region40
        $region39: #{tpu_custom_call.1} parent=31 // pred_region
          %706 = vst [vmem:[%s206] sm:$0xff] %v686
          %707 = vst [vmem:[%s206 + $0x8] sm:$0xff] %v687
          %708 = vst [vmem:[%s206 + $0x10] sm:$0xff] %v688
          %709 = vst [vmem:[%s206 + $0x18] sm:$0xff] %v689
          %710 = vst [vmem:[%s206 + $0x20] sm:$0xff] %v690
          %711 = vst [vmem:[%s206 + $0x28] sm:$0xff] %v691
          %712 = vst [vmem:[%s206 + $0x30] sm:$0xff] %v692
          %713 = vst [vmem:[%s206 + $0x38] sm:$0xff] %v693
          %714 = vst [vmem:[%s206 + $0x40] sm:$0xff] %v694
          %715 = vst [vmem:[%s206 + $0x48] sm:$0xff] %v695
          %716 = vst [vmem:[%s206 + $0x50] sm:$0xff] %v696
          %717 = vst [vmem:[%s206 + $0x58] sm:$0xff] %v697
          %718 = vst [vmem:[%s206 + $0x60] sm:$0xff] %v698
          %719 = vst [vmem:[%s206 + $0x68] sm:$0xff] %v699
          %720 = vst [vmem:[%s206 + $0x70] sm:$0xff] %v700
          %721 = vst [vmem:[%s206 + $0x78] sm:$0xff] %v701
        $region40: #{tpu_custom_call.1} parent=31 // pred_fallthru
          _
        %p722 = scmp.ne.s32.totalorder %s25, 0
        // Predicated region
        $region41: #{tpu_custom_call.1} parent=31 // pred_check
          %p723 = pneg %p722
        $region42: #{tpu_custom_call.1} parent=31 // pred_check_branch
          %725 = sbr.rel (%p723) target = $region44
        $region43: #{tpu_custom_call.1} parent=31 // pred_region
          %v726 = vld [vmem:[%s206] sm:$0xff]
          %v727 = vld [vmem:[%s206 + $0x8] sm:$0xff]
          %v728 = vld [vmem:[%s206 + $0x10] sm:$0xff]
          %v729 = vld [vmem:[%s206 + $0x18] sm:$0xff]
          %v730 = vld [vmem:[%s206 + $0x20] sm:$0xff]
          %v731 = vld [vmem:[%s206 + $0x28] sm:$0xff]
          %v732 = vld [vmem:[%s206 + $0x30] sm:$0xff]
          %v733 = vld [vmem:[%s206 + $0x38] sm:$0xff]
          %v734 = vld [vmem:[%s206 + $0x40] sm:$0xff]
          %v735 = vld [vmem:[%s206 + $0x48] sm:$0xff]
          %v736 = vld [vmem:[%s206 + $0x50] sm:$0xff]
          %v737 = vld [vmem:[%s206 + $0x58] sm:$0xff]
          %v738 = vld [vmem:[%s206 + $0x60] sm:$0xff]
          %v739 = vld [vmem:[%s206 + $0x68] sm:$0xff]
          %v740 = vld [vmem:[%s206 + $0x70] sm:$0xff]
          %v741 = vld [vmem:[%s206 + $0x78] sm:$0xff]
          %v742 = vadd.f32 %v726, %v686
          %v743 = vadd.f32 %v727, %v687
          %v744 = vadd.f32 %v728, %v688
          %v745 = vadd.f32 %v729, %v689
          %v746 = vadd.f32 %v730, %v690
          %v747 = vadd.f32 %v731, %v691
          %v748 = vadd.f32 %v732, %v692
          %v749 = vadd.f32 %v733, %v693
          %v750 = vadd.f32 %v734, %v694
          %v751 = vadd.f32 %v735, %v695
          %v752 = vadd.f32 %v736, %v696
          %v753 = vadd.f32 %v737, %v697
          %v754 = vadd.f32 %v738, %v698
          %v755 = vadd.f32 %v739, %v699
          %v756 = vadd.f32 %v740, %v700
          %v757 = vadd.f32 %v741, %v701
          %758 = vst [vmem:[%s206] sm:$0xff] %v742
          %759 = vst [vmem:[%s206 + $0x8] sm:$0xff] %v743
          %760 = vst [vmem:[%s206 + $0x10] sm:$0xff] %v744
          %761 = vst [vmem:[%s206 + $0x18] sm:$0xff] %v745
          %762 = vst [vmem:[%s206 + $0x20] sm:$0xff] %v746
          %763 = vst [vmem:[%s206 + $0x28] sm:$0xff] %v747
          %764 = vst [vmem:[%s206 + $0x30] sm:$0xff] %v748
          %765 = vst [vmem:[%s206 + $0x38] sm:$0xff] %v749
          %766 = vst [vmem:[%s206 + $0x40] sm:$0xff] %v750
          %767 = vst [vmem:[%s206 + $0x48] sm:$0xff] %v751
          %768 = vst [vmem:[%s206 + $0x50] sm:$0xff] %v752
          %769 = vst [vmem:[%s206 + $0x58] sm:$0xff] %v753
          %770 = vst [vmem:[%s206 + $0x60] sm:$0xff] %v754
          %771 = vst [vmem:[%s206 + $0x68] sm:$0xff] %v755
          %772 = vst [vmem:[%s206 + $0x70] sm:$0xff] %v756
          %773 = vst [vmem:[%s206 + $0x78] sm:$0xff] %v757
        $region44: #{tpu_custom_call.1} parent=31 // pred_fallthru
          _
        %s774 = sand.u32 %s110, 1
        %s775 = scalar_lea.sflag [#allocation4], %s774
        %s776 = sand.u32 %s110, 1
        %s777 = smul.addr %s776, 128
        %s778 = scalar_lea.vmem [#allocation5], %s777
        // Predicated region
        $region45: #{tpu_custom_call.1} parent=31 // pred_check
          %p779 = pneg %p120
        $region46: #{tpu_custom_call.1} parent=31 // pred_check_branch
          %781 = sbr.rel (%p779) target = $region48
        $region47: #{tpu_custom_call.1} parent=31 // pred_region
          %s782 = smul.u32 16, %s24
          %784 = vsyncadd %s775, 0
          %s785 = smul.addr %s782, 8
          %s786 = scalar_lea.hbm %s3, %s785
          %s787 = sshll.u32 %s778, 4
          %s788 = int_to_ptr.vmem [resolvable:$true] %s787
          %s789 = sshll.u32 %s786, 4
          %s790 = int_to_ptr.hbm [resolvable:$true] %s789
          %795 = dma.vmem_to_hbm [thread:$0]  %s788, 2048, %s790, %s775, 128, 128, 8
        $region48: #{tpu_custom_call.1} parent=31 // pred_fallthru
          _
      $region32: #{tpu_custom_call.1} parent=5 // pred_fallthru
        _
      %p796 = scmp.le.s32.totalorder 2, %s15
      // Predicated region
      $region49: #{tpu_custom_call.1} parent=5 // pred_check
        %p797 = pneg %p796
      $region50: #{tpu_custom_call.1} parent=5 // pred_check_branch
        %799 = sbr.rel (%p797) target = $region52
      $region51: #{tpu_custom_call.1} parent=5 // pred_region
        %s800 = ssub.s32 %s15, 2
        // Predicated region
        $region53: #{tpu_custom_call.1} parent=51 // pred_check
          %p801 = pneg %p126
        $region54: #{tpu_custom_call.1} parent=51 // pred_check_branch
          %803 = sbr.rel (%p801) target = $region56
        $region55: #{tpu_custom_call.1} parent=51 // pred_region
          %s804 = sand.u32 %s111, 1
          %s805 = scalar_lea.sflag [#allocation4], %s804
          %s806 = sand.u32 %s111, 1
          %s807 = smul.addr %s806, 128
          %s808 = scalar_lea.vmem [#allocation5], %s807
          %810 = dma.done %s805, 2048
        $region56: #{tpu_custom_call.1} parent=51 // pred_fallthru
          _
      $region52: #{tpu_custom_call.1} parent=5 // pred_fallthru
        _
    $region6: #{tpu_custom_call.1} parent=1 // loop_footer
      %s19 = sadd.s32 1, %s15
    $region7: #{tpu_custom_call.1} parent=1 // loop_footer_branch
      %14 = sbr.rel target = $region3
    $region8: #{tpu_custom_call.1} parent=1 // loop_exit
      _
    %811 = vsyncpa [#allocation3], 1
    %s812 = scalar_lea.sflag [#allocation3], 1
    %813 = vsyncpa %s812, 1
    %814 = vsyncpa [#allocation4], 1
    %s815 = scalar_lea.sflag [#allocation4], 1
    %816 = vsyncpa %s815, 1

</llo_original>
